<compile_context>
chip_gen: v6e
topology: v6e:2x2x1
jax: 0.10.0
libtpu: 0.0.40
codegen_flags: <defaults>
</compile_context>

<pallas_src>
import math

import jax
import jax.numpy as jnp
from jax import lax
from jax.experimental import pallas as pl
from jax.experimental.pallas import tpu as pltpu


def _round_up(a, b):
    return -(-a // b) * b


# ---------------------------------------------------------------------------
# Pallas kernel: one (row-tile, cout-tile) block of the partial convolution.
#   xp_ref   [tp, K]  bf16   im2col patches of (input * mask)
#   ms_ref   [tp, 1]  f32    windowed mask sum (== any channel of mask_conv)
#   w_ref    [K, tc]  bf16   conv weights
#   b_ref    [1, tc]  f32    bias (only when has_bias)
#   out_ref  [tp, tc] f32    scaled partial-conv output
# ---------------------------------------------------------------------------
def _make_partial_conv_kernel(window_size, has_bias):
    def kernel(xp_ref, ms_ref, w_ref, *rest):
        if has_bias:
            b_ref, out_ref = rest
        else:
            (out_ref,) = rest
        conv = jnp.dot(xp_ref[...], w_ref[...],
                       preferred_element_type=jnp.float32)        # MXU, f32 acc
        if has_bias:
            conv = conv + b_ref[...]
        msum = ms_ref[...]                                         # [tp, 1]
        ratio = window_size * pl.reciprocal(msum + 1e-8, approx=False)  # EUP
        om = jnp.clip(msum, 0.0, 1.0)
        out_ref[...] = conv * (ratio * om)                         # VPU
    return kernel


def _im2col_nhwc(x_nchw, k, stride, pad):
    """NCHW -> patches [N*Hout*Wout, Cin*k*k] (Cin-major, (kh,kw)-minor),
    built directly in row-major (N, Hout, Wout) order (no final transpose)."""
    n, c, h, w = x_nchw.shape
    x = jnp.transpose(x_nchw, (0, 2, 3, 1))                        # NHWC
    x = jnp.pad(x, ((0, 0), (pad, pad), (pad, pad), (0, 0)))
    hout = (h + 2 * pad - k) // stride + 1
    wout = (w + 2 * pad - k) // stride + 1
    cols = []
    for kh in range(k):
        for kw in range(k):
            cols.append(x[:, kh:kh + stride * (hout - 1) + 1:stride,
                             kw:kw + stride * (wout - 1) + 1:stride, :])
    pat = jnp.stack(cols, axis=-1)                  # [N, Hout, Wout, C, k*k]
    pat = pat.reshape(n * hout * wout, c * k * k)
    return pat, hout, wout


def _mask_window_sum(mask, k, stride, pad):
    """Per-output-pixel sum of mask over the (Cin, k, k) window.
    Equals every output channel of mask_conv (all-ones weights, no bias)."""
    m = jnp.sum(mask.astype(jnp.float32), axis=1)                  # [N, H, W]
    return lax.reduce_window(m, 0.0, lax.add,
                             window_dimensions=(1, k, k),
                             window_strides=(1, stride, stride),
                             padding=((0, 0), (pad, pad), (pad, pad)))


def _vmem_estimate(tp, kk, tc):
    """Rough double-buffered VMEM footprint in bytes (with (8,128) layout pad)."""
    lane = lambda v: _round_up(max(v, 1), 128)
    sub = lambda v: _round_up(max(v, 1), 8)
    patches = 2 * sub(tp) * lane(kk) * 2          # bf16
    msum = 2 * sub(tp) * lane(1) * 4              # f32
    weight = 2 * sub(kk) * lane(tc) * 2           # bf16
    bias = 2 * sub(1) * lane(tc) * 4              # f32
    out = 2 * sub(tp) * lane(tc) * 4              # f32
    return patches + msum + weight + bias + out


def _pick_tiles(p, kk, c_pad):
    # Cout tile: keep the whole (padded) weight resident when it is small,
    # so it is DMA'd once instead of once per row tile.
    if c_pad <= 512:
        tc = c_pad
    elif c_pad % 256 == 0:
        tc = 256
    else:
        tc = 128
    # Row tile: 512-1024 amortizes the ~0.35us/step grid overhead and keeps the
    # kernel near the HBM roofline; shrink if the footprint threatens v7x VMEM.
    if p <= 1024:
        tp = _round_up(p, 16)
    elif p >= 4096:
        tp = 1024
    else:
        tp = 512
    budget = 40 * (1 << 20)
    while tp > 16 and _vmem_estimate(tp, kk, tc) > budget:
        tp = max(16, _round_up(tp // 2, 16))
    return tp, tc


def partial_conv_pallas(x, mask, weight, bias, stride):
    """Partial_Conv.forward: returns (output, output_mask) in NCHW."""
    n, cin, h, w = x.shape
    cout, wcin, kh, kw = weight.shape
    assert kh == kw and wcin == cin
    k = kh
    pad = k // 2
    window_size = float(kh * kw)
    has_bias = bias is not None

    # input * mask on the compact NCHW tensor (k^2 smaller than patches);
    # cast to bf16 so the im2col intermediate and MXU operands are bf16.
    xm = (x * mask).astype(jnp.bfloat16)
    xp, hout, wout = _im2col_nhwc(xm, k, stride, pad)              # [P, K] bf16
    p, kk = xp.shape

    # mask_conv(mask): channel-invariant windowed sum, computed once, [P, 1].
    msum = _mask_window_sum(mask, k, stride, pad).reshape(p, 1)    # f32

    c_pad = _round_up(cout, 128)
    tp, tc = _pick_tiles(p, kk, c_pad)
    p_pad = _round_up(p, tp)

    # Only the (cheap) row pad survives: K is taken as a full-extent block so
    # no second pass over the k^2-inflated patch stream is needed.
    if p_pad != p:
        xp = jnp.pad(xp, ((0, p_pad - p), (0, 0)))
        msum_p = jnp.pad(msum, ((0, p_pad - p), (0, 0)))
    else:
        msum_p = msum

    wmat = weight.reshape(cout, cin * k * k).T.astype(jnp.bfloat16)   # [K, Cout]
    if c_pad != cout:
        wmat = jnp.pad(wmat, ((0, 0), (0, c_pad - cout)))

    inputs = [xp, msum_p, wmat]
    in_specs = [
        pl.BlockSpec((tp, kk), lambda i, j: (i, 0)),      # patches (row tile)
        pl.BlockSpec((tp, 1), lambda i, j: (i, 0)),       # mask window sum
        pl.BlockSpec((kk, tc), lambda i, j: (0, j)),      # weights (resident
    ]                                                     #   when c_pad <= 512)
    if has_bias:
        bmat = jnp.pad(bias.astype(jnp.float32).reshape(1, cout),
                       ((0, 0), (0, c_pad - cout)))
        inputs.append(bmat)
        in_specs.append(pl.BlockSpec((1, tc), lambda i, j: (0, j)))

    est = _vmem_estimate(tp, kk, tc)
    vmem_limit = int(min(64 * (1 << 20), max(32 * (1 << 20), 2 * est)))

    out = pl.pallas_call(
        _make_partial_conv_kernel(window_size, has_bias),
        out_shape=jax.ShapeDtypeStruct((p_pad, c_pad), jnp.float32),
        grid=(p_pad // tp, c_pad // tc),
        in_specs=in_specs,
        out_specs=pl.BlockSpec((tp, tc), lambda i, j: (i, j)),
        compiler_params=pltpu.CompilerParams(
            dimension_semantics=("parallel", "parallel"),
            vmem_limit_bytes=vmem_limit),
    )(*inputs)

    out = out[:p, :cout].reshape(n, hout, wout, cout).transpose(0, 3, 1, 2)
    # output_mask = clamp(mask_conv(mask), 0, 1): channel-invariant, so
    # broadcast the per-pixel value to Cout on the host (no wasted HBM writes).
    om = jnp.clip(msum, 0.0, 1.0).reshape(n, 1, hout, wout)
    om = jnp.broadcast_to(om, (n, cout, hout, wout))
    return out, om


# ---------------------------------------------------------------------------
# Pure-JAX reference (correctness check only) — mirrors the PyTorch forward.
# ---------------------------------------------------------------------------
def ref_partial_conv(x, mask, weight, bias, stride):
    k = weight.shape[2]
    pad = k // 2
    dn = ("NCHW", "OIHW", "NCHW")
    conv = lax.conv_general_dilated(x * mask, weight, (stride, stride),
                                    [(pad, pad), (pad, pad)],
                                    dimension_numbers=dn,
                                    precision=lax.Precision.HIGHEST)
    if bias is not None:
        conv = conv + bias[None, :, None, None]
    msum = lax.conv_general_dilated(mask, jnp.ones_like(weight),
                                    (stride, stride),
                                    [(pad, pad), (pad, pad)],
                                    dimension_numbers=dn,
                                    precision=lax.Precision.HIGHEST)
    ratio = (k * k) / (msum + 1e-8)
    om = jnp.clip(msum, 0.0, 1.0)
    out = conv * (ratio * om)
    return out, om


if __name__ == "__main__":
    key = jax.random.PRNGKey(0)
    fwd = jax.jit(partial_conv_pallas, static_argnums=(4,))

    configs = [
        # (cin, cout, ksize, stride, has_bias)
        (4, 64, 7, 2, True),     # encoder-style, bias
        (32, 128, 5, 2, False),  # no-bias specialization
        (48, 256, 3, 1, True),   # tc=256 resident-weight path, P=512 row tile
    ]
    for idx, (cin, cout, k, stride, has_bias) in enumerate(configs):
        key, kx, km, kw_, kb = jax.random.split(key, 5)
        x = jax.random.normal(kx, (2, cin, 16, 16), jnp.float32)
        mask = (jax.random.uniform(km, (2, cin, 16, 16)) > 0.25).astype(
            jnp.float32)
        if idx == 2:
            mask = mask.at[:, :, :4, :4].set(0.0)   # a fully-masked hole
        std = math.sqrt(2.0 / (cin * k * k))        # kaiming_normal, fan_in
        weight = std * jax.random.normal(kw_, (cout, cin, k, k), jnp.float32)
        bias = (0.05 * jax.random.normal(kb, (cout,), jnp.float32)
                if has_bias else None)

        out, om = jax.block_until_ready(fwd(x, mask, weight, bias, stride))
        ref_out, ref_om = ref_partial_conv(x, mask, weight, bias, stride)

        assert out.shape == ref_out.shape, (out.shape, ref_out.shape)
        assert bool(jnp.all(jnp.isfinite(out)))
        max_err = float(jnp.max(jnp.abs(out - ref_out)))
        assert bool(jnp.allclose(out, ref_out, rtol=5e-2, atol=5e-2)), (
            idx, max_err)
        assert bool(jnp.allclose(om, ref_om, rtol=1e-5, atol=1e-5)), idx

    print("KERNEL_OK")
</pallas_src>

<mosaic_0001>
module attributes {stable_mosaic.version = 11 : i64} {
  func.func @kernel(%arg0: i32, %arg1: i32, %arg2: memref<128x196xbf16, #tpu.memory_space<vmem>>, %arg3: memref<128x1xf32, #tpu.memory_space<vmem>>, %arg4: memref<196x128xbf16, #tpu.memory_space<vmem>>, %arg5: memref<1x128xf32, #tpu.memory_space<vmem>>, %arg6: memref<128x128xf32, #tpu.memory_space<vmem>>) attributes {dimension_semantics = [#tpu.dimension_semantics<parallel>, #tpu.dimension_semantics<parallel>], iteration_bounds = array<i64: 1, 1>, scalar_prefetch = 0 : i64, scratch_operands = 0 : i64, tpu.core_type = #tpu.core_type<tc>, window_params = [{transform_indices = @transform_0, window_bounds = array<i64: 128, 196>}, {transform_indices = @transform_1, window_bounds = array<i64: 128, 1>}, {transform_indices = @transform_2, window_bounds = array<i64: 196, 128>}, {transform_indices = @transform_3, window_bounds = array<i64: 1, 128>}, {transform_indices = @transform_4, window_bounds = array<i64: 128, 128>}]} {
    %c0 = arith.constant 0 : index
    %c0_0 = arith.constant 0 : index
    %0 = vector.load %arg2[%c0, %c0_0] : memref<128x196xbf16, #tpu.memory_space<vmem>>, vector<128x196xbf16>
    %c0_1 = arith.constant 0 : index
    %c0_2 = arith.constant 0 : index
    %1 = vector.load %arg4[%c0_1, %c0_2] : memref<196x128xbf16, #tpu.memory_space<vmem>>, vector<196x128xbf16>
    %cst = arith.constant dense<0.000000e+00> : vector<128x128xf32>
    %2 = tpu.matmul %0, %1, %cst {dimension_numbers = #tpu.dot_dimension_numbers<[1], [0], [0], [1], [0, 0, 1, 1], [], []>} : vector<128x196xbf16>, vector<196x128xbf16>, vector<128x128xf32> -> vector<128x128xf32>
    %c0_3 = arith.constant 0 : index
    %c0_4 = arith.constant 0 : index
    %3 = vector.load %arg5[%c0_3, %c0_4] : memref<1x128xf32, #tpu.memory_space<vmem>>, vector<1x128xf32>
    %4 = vector.broadcast %3 : vector<1x128xf32> to vector<128x128xf32>
    %5 = arith.addf %2, %4 : vector<128x128xf32>
    %c0_5 = arith.constant 0 : index
    %c0_6 = arith.constant 0 : index
    %6 = vector.load %arg3[%c0_5, %c0_6] : memref<128x1xf32, #tpu.memory_space<vmem>>, vector<128x1xf32>
    %cst_7 = arith.constant 9.99999993E-9 : f32
    %7 = vector.broadcast %cst_7 : f32 to vector<128x1xf32>
    %8 = arith.addf %6, %7 : vector<128x1xf32>
    %9 = tpu.reciprocal %8 : vector<128x1xf32> -> vector<128x1xf32>
    %cst_8 = arith.constant 4.900000e+01 : f32
    %10 = vector.broadcast %cst_8 : f32 to vector<128x1xf32>
    %11 = arith.mulf %10, %9 : vector<128x1xf32>
    %cst_9 = arith.constant 0.000000e+00 : f32
    %cst_10 = arith.constant 1.000000e+00 : f32
    %12 = vector.broadcast %cst_9 : f32 to vector<128x1xf32>
    %13 = arith.maximumf %12, %6 : vector<128x1xf32>
    %14 = vector.broadcast %cst_10 : f32 to vector<128x1xf32>
    %15 = arith.minimumf %14, %13 : vector<128x1xf32>
    %16 = arith.mulf %11, %15 : vector<128x1xf32>
    %17 = vector.broadcast %16 : vector<128x1xf32> to vector<128x128xf32>
    %18 = arith.mulf %5, %17 : vector<128x128xf32>
    %c0_11 = arith.constant 0 : index
    %c0_12 = arith.constant 0 : index
    %19 = vector.load %arg6[%c0_11, %c0_12] : memref<128x128xf32, #tpu.memory_space<vmem>>, vector<128x128xf32>
    tpu.vector_store %arg6[%c0_11, %c0_12], %18 {strides = array<i32>} : memref<128x128xf32, #tpu.memory_space<vmem>>, vector<128x128xf32>,
    return
  }
  func.func @transform_0(%arg0: i32, %arg1: i32) -> (i32, i32) {
    %c0_i32 = arith.constant 0 : i32
    %c0_i32_0 = arith.constant 0 : i32
    return %arg0, %c0_i32 : i32, i32
  }
  func.func @transform_1(%arg0: i32, %arg1: i32) -> (i32, i32) {
    %c0_i32 = arith.constant 0 : i32
    %c0_i32_0 = arith.constant 0 : i32
    return %arg0, %c0_i32 : i32, i32
  }
  func.func @transform_2(%arg0: i32, %arg1: i32) -> (i32, i32) {
    %c0_i32 = arith.constant 0 : i32
    %c0_i32_0 = arith.constant 0 : i32
    return %c0_i32, %arg1 : i32, i32
  }
  func.func @transform_3(%arg0: i32, %arg1: i32) -> (i32, i32) {
    %c0_i32 = arith.constant 0 : i32
    %c0_i32_0 = arith.constant 0 : i32
    return %c0_i32, %arg1 : i32, i32
  }
  func.func @transform_4(%arg0: i32, %arg1: i32) -> (i32, i32) {
    %c0_i32 = arith.constant 0 : i32
    return %arg0, %arg1 : i32, i32
  }
}

</mosaic_0001>

<llo_original>
// kernel: partial_conv_pallas.1
$region0: #{partial_conv_pallas.1}
  #allocation0 [shape = 'u32[]', space=smem, size = 0x4, offset = 0x4, fixed_abs, tag = 'smem constant byte address 0x4 - core index']
  #allocation1 [shape = 'u32[144,128]{1,0:T(1,128)}', space=vmem, size = 0x12000, scoped, tag = 'internal scratch']
  %s0 = inlined_call_operand.vmem [shape: bf16[128,196], index: 0, kind: input, shape index: {}]
  %s1 = inlined_call_operand.vmem [shape: f32[128,1], index: 1, kind: input, shape index: {}]
  %s2 = inlined_call_operand.vmem [shape: bf16[196,128], index: 2, kind: input, shape index: {}]
  %s3 = inlined_call_operand.vmem [shape: f32[1,128], index: 3, kind: input, shape index: {}]
  %s4 = inlined_call_operand.hbm [shape: f32[128,128], index: 4, kind: output, shape index: {}]
  %s5 = sld [smem:[#allocation0]]
  $region26: #{partial_conv_pallas.1} parent=0
    _
  %s7 = ssub.s32 1, %s5
  %s8 = scalar_select 0, %s7, %s5
  $region1: #{partial_conv_pallas.1} parent=0
    #allocation2 [shape = 'u8[65536]{0}', space=vmem, size = 0x10000, scoped, tag = 'output window, operand 0, single buffered']
    #allocation3 [shape = 's32[1]{0}', space=sflag, size = 0x4, scoped, tag = 'scoped memory for partial_conv_pallas.1']
    %9 = vsyncpa [#allocation3], 0
    // Predicated region
    $region2: #{partial_conv_pallas.1} parent=1 // pred_check
      _
    $region3: #{partial_conv_pallas.1} parent=1 // pred_check_branch
      %11 = sbr.rel (0) target = $region5
    $region4: #{partial_conv_pallas.1} parent=1 // pred_region
      _
    $region5: #{partial_conv_pallas.1} parent=1 // pred_fallthru
      _
    // Predicated region
    $region6: #{partial_conv_pallas.1} parent=1 // pred_check
      _
    $region7: #{partial_conv_pallas.1} parent=1 // pred_check_branch
      %13 = sbr.rel (0) target = $region9
    $region8: #{partial_conv_pallas.1} parent=1 // pred_region
      _
    $region9: #{partial_conv_pallas.1} parent=1 // pred_fallthru
      _
    // Predicated region
    $region10: #{partial_conv_pallas.1} parent=1 // pred_check
      _
    $region11: #{partial_conv_pallas.1} parent=1 // pred_check_branch
      %15 = sbr.rel (0) target = $region13
    $region12: #{partial_conv_pallas.1} parent=1 // pred_region
      _
    $region13: #{partial_conv_pallas.1} parent=1 // pred_fallthru
      _
    // Predicated region
    $region14: #{partial_conv_pallas.1} parent=1 // pred_check
      _
    $region15: #{partial_conv_pallas.1} parent=1 // pred_check_branch
      %17 = sbr.rel (0) target = $region17
    $region16: #{partial_conv_pallas.1} parent=1 // pred_region
      _
    $region17: #{partial_conv_pallas.1} parent=1 // pred_fallthru
      _
    %v19 = vld [vmem:[%s0] sm:$0xff]
    %v20 = vld [vmem:[%s0 + $0x8] sm:$0xff]
    %v21 = vld [vmem:[%s0 + $0x10] sm:$0xff]
    %v22 = vld [vmem:[%s0 + $0x18] sm:$0xff]
    %v23 = vld [vmem:[%s0 + $0x20] sm:$0xff]
    %v24 = vld [vmem:[%s0 + $0x28] sm:$0xff]
    %v25 = vld [vmem:[%s0 + $0x30] sm:$0xff]
    %v26 = vld [vmem:[%s0 + $0x38] sm:$0xff]
    %v27 = vld [vmem:[%s0 + $0x40] sm:$0xff]
    %v28 = vld [vmem:[%s0 + $0x48] sm:$0xff]
    %v29 = vld [vmem:[%s0 + $0x50] sm:$0xff]
    %v30 = vld [vmem:[%s0 + $0x58] sm:$0xff]
    %v31 = vld [vmem:[%s0 + $0x60] sm:$0xff]
    %v32 = vld [vmem:[%s0 + $0x68] sm:$0xff]
    %v33 = vld [vmem:[%s0 + $0x70] sm:$0xff]
    %v34 = vld [vmem:[%s0 + $0x78] sm:$0xff]
    %v35 = vld [vmem:[%s2] sm:$0xf]
    %v36 = vld [vmem:[%s2 + $0x4] sm:$0xf]
    %v37 = vld [vmem:[%s2 + $0x8] sm:$0xf]
    %v38 = vld [vmem:[%s2 + $0xc] sm:$0xf]
    %v39 = vld [vmem:[%s2 + $0x10] sm:$0xf]
    %v40 = vld [vmem:[%s2 + $0x14] sm:$0xf]
    %v41 = vld [vmem:[%s2 + $0x18] sm:$0xf]
    %v42 = vld [vmem:[%s2 + $0x1c] sm:$0xf]
    %v43 = vld [vmem:[%s2 + $0x20] sm:$0xf]
    %v44 = vld [vmem:[%s2 + $0x24] sm:$0xf]
    %v45 = vld [vmem:[%s2 + $0x28] sm:$0xf]
    %v46 = vld [vmem:[%s2 + $0x2c] sm:$0xf]
    %v47 = vld [vmem:[%s2 + $0x30] sm:$0xf]
    %v48 = vld [vmem:[%s2 + $0x34] sm:$0xf]
    %v49 = vld [vmem:[%s2 + $0x38] sm:$0xf]
    %v50 = vld [vmem:[%s2 + $0x3c] sm:$0xf]
    %v51 = vld [vmem:[%s2 + $0x40] sm:$0xf]
    %v52 = vld [vmem:[%s2 + $0x44] sm:$0xf]
    %v53 = vld [vmem:[%s2 + $0x48] sm:$0xf]
    %v54 = vld [vmem:[%s2 + $0x4c] sm:$0xf]
    %v55 = vld [vmem:[%s2 + $0x50] sm:$0xf]
    %v56 = vld [vmem:[%s2 + $0x54] sm:$0xf]
    %v57 = vld [vmem:[%s2 + $0x58] sm:$0xf]
    %v58 = vld [vmem:[%s2 + $0x5c] sm:$0xf]
    %v59 = vld [vmem:[%s2 + $0x60] sm:$0x3]
    %v60 = vld [vmem:[%s3] sm:$0x1]
    %v62 = vlaneseq
    %v63 = vshrl.u32 %v62, 7
    %v64 = vsub.s32 0, %v63
    %v65 = vrot.slane %v60, %v64
    %v83 = vunpack.c.l.b16 %v19
    %v84 = vunpack.c.h.b16 %v19
    %v85 = vunpack.c.l.b16 %v20
    %v86 = vunpack.c.h.b16 %v20
    %v87 = vunpack.c.l.b16 %v21
    %v88 = vunpack.c.h.b16 %v21
    %v89 = vunpack.c.l.b16 %v22
    %v90 = vunpack.c.h.b16 %v22
    %v91 = vunpack.c.l.b16 %v23
    %v92 = vunpack.c.h.b16 %v23
    %v93 = vunpack.c.l.b16 %v24
    %v94 = vunpack.c.h.b16 %v24
    %v95 = vunpack.c.l.b16 %v25
    %v96 = vunpack.c.h.b16 %v25
    %v97 = vunpack.c.l.b16 %v26
    %v98 = vunpack.c.h.b16 %v26
    %v99 = vunpack.c.l.b16 %v27
    %v100 = vunpack.c.h.b16 %v27
    %v101 = vunpack.c.l.b16 %v28
    %v102 = vunpack.c.h.b16 %v28
    %v103 = vunpack.c.l.b16 %v29
    %v104 = vunpack.c.h.b16 %v29
    %v105 = vunpack.c.l.b16 %v30
    %v106 = vunpack.c.h.b16 %v30
    %v107 = vunpack.c.l.b16 %v31
    %v108 = vunpack.c.h.b16 %v31
    %v109 = vunpack.c.l.b16 %v32
    %v110 = vunpack.c.h.b16 %v32
    %v111 = vunpack.c.l.b16 %v33
    %v112 = vunpack.c.h.b16 %v33
    %v113 = vunpack.c.l.b16 %v34
    %v114 = vunpack.c.h.b16 %v34
    %v115 = vpack.c.b16 %v85, %v83
    %v116 = vpack.c.b16 %v86, %v84
    %v117 = vpack.c.b16 %v89, %v87
    %v118 = vpack.c.b16 %v90, %v88
    %v119 = vpack.c.b16 %v93, %v91
    %v120 = vpack.c.b16 %v94, %v92
    %v121 = vpack.c.b16 %v97, %v95
    %v122 = vpack.c.b16 %v98, %v96
    %v123 = vpack.c.b16 %v101, %v99
    %v124 = vpack.c.b16 %v102, %v100
    %v125 = vpack.c.b16 %v105, %v103
    %v126 = vpack.c.b16 %v106, %v104
    %v127 = vpack.c.b16 %v109, %v107
    %v128 = vpack.c.b16 %v110, %v108
    %v129 = vpack.c.b16 %v113, %v111
    %v130 = vpack.c.b16 %v114, %v112
    %v164 = vunpack.c.l.b16 %v35
    %v165 = vunpack.c.l.b16 %v36
    %v166 = vunpack.c.l.b16 %v37
    %v167 = vunpack.c.l.b16 %v38
    %v168 = vunpack.c.l.b16 %v39
    %v169 = vunpack.c.l.b16 %v40
    %v170 = vunpack.c.l.b16 %v41
    %v171 = vunpack.c.l.b16 %v42
    %v172 = vunpack.c.l.b16 %v43
    %v173 = vunpack.c.l.b16 %v44
    %v174 = vunpack.c.l.b16 %v45
    %v175 = vunpack.c.l.b16 %v46
    %v176 = vunpack.c.l.b16 %v47
    %v177 = vunpack.c.l.b16 %v48
    %v178 = vunpack.c.l.b16 %v49
    %v179 = vunpack.c.l.b16 %v50
    %v180 = vunpack.c.l.b16 %v51
    %v181 = vunpack.c.l.b16 %v52
    %v182 = vunpack.c.l.b16 %v53
    %v183 = vunpack.c.l.b16 %v54
    %v184 = vunpack.c.l.b16 %v55
    %v185 = vunpack.c.l.b16 %v56
    %v186 = vunpack.c.l.b16 %v57
    %v187 = vunpack.c.l.b16 %v58
    %v188 = vunpack.c.l.b16 %v59
    %v189 = vpack.c.b16 %v165, %v164
    %v190 = vpack.c.b16 %v167, %v166
    %v191 = vpack.c.b16 %v169, %v168
    %v192 = vpack.c.b16 %v171, %v170
    %v193 = vpack.c.b16 %v173, %v172
    %v194 = vpack.c.b16 %v175, %v174
    %v195 = vpack.c.b16 %v177, %v176
    %v196 = vpack.c.b16 %v179, %v178
    %v197 = vpack.c.b16 %v181, %v180
    %v198 = vpack.c.b16 %v183, %v182
    %v199 = vpack.c.b16 %v185, %v184
    %v200 = vpack.c.b16 %v187, %v186
    %v201 = vpack.c.b16 %v188, %v188
    %vm214 = vcmask 556032
    %v216 = vsel %vm214, %v116, 0
    %v219 = vsel %vm214, %v118, 0
    %v222 = vsel %vm214, %v120, 0
    %v225 = vsel %vm214, %v122, 0
    %v228 = vsel %vm214, %v124, 0
    %v231 = vsel %vm214, %v126, 0
    %v234 = vsel %vm214, %v128, 0
    %v237 = vsel %vm214, %v130, 0
    %vm239 = vcmask 1041408
    %v241 = vsel %vm239, %v201, 0
    %243 = vmatprep.subr.bf16.mxu0 0
    %244 = vmatpush1.bf16.msra.mxu0 %v196
    %245 = vmatprep.subr.bf16.mxu0 0
    %246 = vmatpush1.bf16.msra.mxu0 %v195
    %247 = vmatprep.subr.bf16.mxu0 0
    %248 = vmatpush1.bf16.msra.mxu0 %v194
    %249 = vmatprep.subr.bf16.mxu0 0
    %250 = vmatpush1.bf16.msra.mxu0 %v193
    %251 = vmatprep.subr.bf16.mxu0 0
    %252 = vmatpush1.bf16.msra.mxu0 %v192
    %253 = vmatprep.subr.bf16.mxu0 0
    %254 = vmatpush1.bf16.msra.mxu0 %v191
    %255 = vmatprep.subr.bf16.mxu0 0
    %256 = vmatpush1.bf16.msra.mxu0 %v190
    %257 = vmatprep.subr.bf16.mxu0 0
    %258 = vmatpush1.bf16.msra.mxu0 %v189
    %259 = vmatprep.subr.bf16.mxu0 0
    %260 = vmatpush2.bf16.msra.mxu0 0
    %261 = vmatprep.subr.bf16.mxu0 0
    %262 = vmatpush2.bf16.msra.mxu0 0
    %263 = vmatprep.subr.bf16.mxu0 0
    %264 = vmatpush2.bf16.msra.mxu0 0
    %265 = vmatprep.subr.bf16.mxu0 0
    %266 = vmatpush2.bf16.msra.mxu0 %v241
    %267 = vmatprep.subr.bf16.mxu0 0
    %268 = vmatpush2.bf16.msra.mxu0 %v200
    %269 = vmatprep.subr.bf16.mxu0 0
    %270 = vmatpush2.bf16.msra.mxu0 %v199
    %271 = vmatprep.subr.bf16.mxu0 0
    %272 = vmatpush2.bf16.msra.mxu0 %v198
    %273 = vmatprep.subr.bf16.mxu0 0
    %274 = vmatpush2.bf16.msra.mxu0 %v197
    %275 = vmatprep.mubr.bf16.mxu0 %v216
    %276 = vmatmul.mubr.bf16.gmra.mxu0 %v115
    %v277 = vpop.f32.mrf.mxu0
    %v278 = vadd.f32 %v65, %v277
    %v279 = vpop.f32.mrf.mxu0
    %v280 = vpop.f32.mrf.mxu0
    %v281 = vadd.f32 %v65, %v280
    %v282 = vpop.f32.mrf.mxu0
    %283 = vmatprep.mubr.bf16.mxu0 %v219
    %284 = vmatmul.mubr.bf16.gmra.mxu0 %v117
    %v285 = vpop.f32.mrf.mxu0
    %v286 = vadd.f32 %v65, %v285
    %v287 = vpop.f32.mrf.mxu0
    %v288 = vpop.f32.mrf.mxu0
    %v289 = vadd.f32 %v65, %v288
    %v290 = vpop.f32.mrf.mxu0
    %291 = vmatprep.mubr.bf16.mxu0 %v222
    %292 = vmatmul.mubr.bf16.gmra.mxu0 %v119
    %v293 = vpop.f32.mrf.mxu0
    %v294 = vadd.f32 %v65, %v293
    %v295 = vpop.f32.mrf.mxu0
    %v296 = vpop.f32.mrf.mxu0
    %v297 = vadd.f32 %v65, %v296
    %v298 = vpop.f32.mrf.mxu0
    %299 = vmatprep.mubr.bf16.mxu0 %v225
    %300 = vmatmul.mubr.bf16.gmra.mxu0 %v121
    %v301 = vpop.f32.mrf.mxu0
    %v302 = vadd.f32 %v65, %v301
    %v303 = vpop.f32.mrf.mxu0
    %v304 = vpop.f32.mrf.mxu0
    %v305 = vadd.f32 %v65, %v304
    %v306 = vpop.f32.mrf.mxu0
    %307 = vmatprep.mubr.bf16.mxu0 %v228
    %308 = vmatmul.mubr.bf16.gmra.mxu0 %v123
    %v309 = vpop.f32.mrf.mxu0
    %v310 = vadd.f32 %v65, %v309
    %v311 = vpop.f32.mrf.mxu0
    %v312 = vpop.f32.mrf.mxu0
    %v313 = vadd.f32 %v65, %v312
    %v314 = vpop.f32.mrf.mxu0
    %315 = vmatprep.mubr.bf16.mxu0 %v231
    %316 = vmatmul.mubr.bf16.gmra.mxu0 %v125
    %v317 = vpop.f32.mrf.mxu0
    %v318 = vadd.f32 %v65, %v317
    %v319 = vpop.f32.mrf.mxu0
    %v320 = vpop.f32.mrf.mxu0
    %v321 = vadd.f32 %v65, %v320
    %v322 = vpop.f32.mrf.mxu0
    %323 = vmatprep.mubr.bf16.mxu0 %v234
    %324 = vmatmul.mubr.bf16.gmra.mxu0 %v127
    %v325 = vpop.f32.mrf.mxu0
    %v326 = vadd.f32 %v65, %v325
    %v327 = vpop.f32.mrf.mxu0
    %v328 = vpop.f32.mrf.mxu0
    %v329 = vadd.f32 %v65, %v328
    %v330 = vpop.f32.mrf.mxu0
    %331 = vmatprep.mubr.bf16.mxu0 %v237
    %332 = vmatmul.mubr.bf16.gmra.mxu0 %v129
    %v333 = vpop.f32.mrf.mxu0
    %v334 = vadd.f32 %v65, %v333
    %v335 = vpop.f32.mrf.mxu0
    %v336 = vpop.f32.mrf.mxu0
    %v337 = vadd.f32 %v65, %v336
    %v338 = vpop.f32.mrf.mxu0
    %339 = vdwg.mxu0
    %v340 = vld [vmem:[%s1] sm:$0xff]
    %v341 = vld [vmem:[%s1 + $0x8] sm:$0xff]
    %v342 = vld [vmem:[%s1 + $0x10] sm:$0xff]
    %v343 = vld [vmem:[%s1 + $0x18] sm:$0xff]
    %v344 = vld [vmem:[%s1 + $0x20] sm:$0xff]
    %v345 = vld [vmem:[%s1 + $0x28] sm:$0xff]
    %v346 = vld [vmem:[%s1 + $0x30] sm:$0xff]
    %v347 = vld [vmem:[%s1 + $0x38] sm:$0xff]
    %v348 = vld [vmem:[%s1 + $0x40] sm:$0xff]
    %v349 = vld [vmem:[%s1 + $0x48] sm:$0xff]
    %v350 = vld [vmem:[%s1 + $0x50] sm:$0xff]
    %v351 = vld [vmem:[%s1 + $0x58] sm:$0xff]
    %v352 = vld [vmem:[%s1 + $0x60] sm:$0xff]
    %v353 = vld [vmem:[%s1 + $0x68] sm:$0xff]
    %v354 = vld [vmem:[%s1 + $0x70] sm:$0xff]
    %v355 = vld [vmem:[%s1 + $0x78] sm:$0xff]
    %v356 = vadd.f32 %v340, 1e-08
    %v357 = vadd.f32 %v341, 1e-08
    %v358 = vadd.f32 %v342, 1e-08
    %v359 = vadd.f32 %v343, 1e-08
    %v360 = vadd.f32 %v344, 1e-08
    %v361 = vadd.f32 %v345, 1e-08
    %v362 = vadd.f32 %v346, 1e-08
    %v363 = vadd.f32 %v347, 1e-08
    %v364 = vadd.f32 %v348, 1e-08
    %v365 = vadd.f32 %v349, 1e-08
    %v366 = vadd.f32 %v350, 1e-08
    %v367 = vadd.f32 %v351, 1e-08
    %v368 = vadd.f32 %v352, 1e-08
    %v369 = vadd.f32 %v353, 1e-08
    %v370 = vadd.f32 %v354, 1e-08
    %v371 = vadd.f32 %v355, 1e-08
    %v372 = vrcp.pop %v356
    %v373 = vrcp.pop %v357
    %v374 = vrcp.pop %v358
    %v375 = vrcp.pop %v359
    %v376 = vrcp.pop %v360
    %v377 = vrcp.pop %v361
    %v378 = vrcp.pop %v362
    %v379 = vrcp.pop %v363
    %v380 = vrcp.pop %v364
    %v381 = vrcp.pop %v365
    %v382 = vrcp.pop %v366
    %v383 = vrcp.pop %v367
    %v384 = vrcp.pop %v368
    %v385 = vrcp.pop %v369
    %v386 = vrcp.pop %v370
    %v387 = vrcp.pop %v371
    %v388 = vmul.f32 %v372, 49.0
    %v389 = vmul.f32 %v373, 49.0
    %v390 = vmul.f32 %v374, 49.0
    %v391 = vmul.f32 %v375, 49.0
    %v392 = vmul.f32 %v376, 49.0
    %v393 = vmul.f32 %v377, 49.0
    %v394 = vmul.f32 %v378, 49.0
    %v395 = vmul.f32 %v379, 49.0
    %v396 = vmul.f32 %v380, 49.0
    %v397 = vmul.f32 %v381, 49.0
    %v398 = vmul.f32 %v382, 49.0
    %v399 = vmul.f32 %v383, 49.0
    %v400 = vmul.f32 %v384, 49.0
    %v401 = vmul.f32 %v385, 49.0
    %v402 = vmul.f32 %v386, 49.0
    %v403 = vmul.f32 %v387, 49.0
    %v404 = vmax.f32 %v340, 0.0
    %v405 = vmax.f32 %v341, 0.0
    %v406 = vmax.f32 %v342, 0.0
    %v407 = vmax.f32 %v343, 0.0
    %v408 = vmax.f32 %v344, 0.0
    %v409 = vmax.f32 %v345, 0.0
    %v410 = vmax.f32 %v346, 0.0
    %v411 = vmax.f32 %v347, 0.0
    %v412 = vmax.f32 %v348, 0.0
    %v413 = vmax.f32 %v349, 0.0
    %v414 = vmax.f32 %v350, 0.0
    %v415 = vmax.f32 %v351, 0.0
    %v416 = vmax.f32 %v352, 0.0
    %v417 = vmax.f32 %v353, 0.0
    %v418 = vmax.f32 %v354, 0.0
    %v419 = vmax.f32 %v355, 0.0
    %v420 = vmin.f32 %v404, 1.0
    %v421 = vmin.f32 %v405, 1.0
    %v422 = vmin.f32 %v406, 1.0
    %v423 = vmin.f32 %v407, 1.0
    %v424 = vmin.f32 %v408, 1.0
    %v425 = vmin.f32 %v409, 1.0
    %v426 = vmin.f32 %v410, 1.0
    %v427 = vmin.f32 %v411, 1.0
    %v428 = vmin.f32 %v412, 1.0
    %v429 = vmin.f32 %v413, 1.0
    %v430 = vmin.f32 %v414, 1.0
    %v431 = vmin.f32 %v415, 1.0
    %v432 = vmin.f32 %v416, 1.0
    %v433 = vmin.f32 %v417, 1.0
    %v434 = vmin.f32 %v418, 1.0
    %v435 = vmin.f32 %v419, 1.0
    %v436 = vmul.f32 %v388, %v420
    %v437 = vmul.f32 %v389, %v421
    %v438 = vmul.f32 %v390, %v422
    %v439 = vmul.f32 %v391, %v423
    %v440 = vmul.f32 %v392, %v424
    %v441 = vmul.f32 %v393, %v425
    %v442 = vmul.f32 %v394, %v426
    %v443 = vmul.f32 %v395, %v427
    %v444 = vmul.f32 %v396, %v428
    %v445 = vmul.f32 %v397, %v429
    %v446 = vmul.f32 %v398, %v430
    %v447 = vmul.f32 %v399, %v431
    %v448 = vmul.f32 %v400, %v432
    %v449 = vmul.f32 %v401, %v433
    %v450 = vmul.f32 %v402, %v434
    %v451 = vmul.f32 %v403, %v435
    %453 = vset.pattern.permute.xlu0 0
    %454 = vperm.xlu0 %453, %v436
    %v455 = vpop.permute.xlu0 %454
    %458 = vset.pattern.permute.xlu0 0
    %459 = vperm.xlu0 %458, %v437
    %v460 = vpop.permute.xlu0 %459
    %463 = vset.pattern.permute.xlu0 0
    %464 = vperm.xlu0 %463, %v438
    %v465 = vpop.permute.xlu0 %464
    %468 = vset.pattern.permute.xlu0 0
    %469 = vperm.xlu0 %468, %v439
    %v470 = vpop.permute.xlu0 %469
    %473 = vset.pattern.permute.xlu0 0
    %474 = vperm.xlu0 %473, %v440
    %v475 = vpop.permute.xlu0 %474
    %478 = vset.pattern.permute.xlu0 0
    %479 = vperm.xlu0 %478, %v441
    %v480 = vpop.permute.xlu0 %479
    %483 = vset.pattern.permute.xlu0 0
    %484 = vperm.xlu0 %483, %v442
    %v485 = vpop.permute.xlu0 %484
    %488 = vset.pattern.permute.xlu0 0
    %489 = vperm.xlu0 %488, %v443
    %v490 = vpop.permute.xlu0 %489
    %493 = vset.pattern.permute.xlu0 0
    %494 = vperm.xlu0 %493, %v444
    %v495 = vpop.permute.xlu0 %494
    %498 = vset.pattern.permute.xlu0 0
    %499 = vperm.xlu0 %498, %v445
    %v500 = vpop.permute.xlu0 %499
    %503 = vset.pattern.permute.xlu0 0
    %504 = vperm.xlu0 %503, %v446
    %v505 = vpop.permute.xlu0 %504
    %508 = vset.pattern.permute.xlu0 0
    %509 = vperm.xlu0 %508, %v447
    %v510 = vpop.permute.xlu0 %509
    %513 = vset.pattern.permute.xlu0 0
    %514 = vperm.xlu0 %513, %v448
    %v515 = vpop.permute.xlu0 %514
    %518 = vset.pattern.permute.xlu0 0
    %519 = vperm.xlu0 %518, %v449
    %v520 = vpop.permute.xlu0 %519
    %523 = vset.pattern.permute.xlu0 0
    %524 = vperm.xlu0 %523, %v450
    %v525 = vpop.permute.xlu0 %524
    %528 = vset.pattern.permute.xlu0 0
    %529 = vperm.xlu0 %528, %v451
    %v530 = vpop.permute.xlu0 %529
    %v532 = vmul.f32 %v278, %v455
    %v533 = vmul.f32 %v281, %v460
    %v534 = vmul.f32 %v286, %v465
    %v535 = vmul.f32 %v289, %v470
    %v536 = vmul.f32 %v294, %v475
    %v537 = vmul.f32 %v297, %v480
    %v538 = vmul.f32 %v302, %v485
    %v539 = vmul.f32 %v305, %v490
    %v540 = vmul.f32 %v310, %v495
    %v541 = vmul.f32 %v313, %v500
    %v542 = vmul.f32 %v318, %v505
    %v543 = vmul.f32 %v321, %v510
    %v544 = vmul.f32 %v326, %v515
    %v545 = vmul.f32 %v329, %v520
    %v546 = vmul.f32 %v334, %v525
    %v547 = vmul.f32 %v337, %v530
    %548 = vst [vmem:[#allocation2] sm:$0xff] %v532
    %549 = vst [vmem:[#allocation2 + $0x8] sm:$0xff] %v533
    %550 = vst [vmem:[#allocation2 + $0x10] sm:$0xff] %v534
    %551 = vst [vmem:[#allocation2 + $0x18] sm:$0xff] %v535
    %552 = vst [vmem:[#allocation2 + $0x20] sm:$0xff] %v536
    %553 = vst [vmem:[#allocation2 + $0x28] sm:$0xff] %v537
    %554 = vst [vmem:[#allocation2 + $0x30] sm:$0xff] %v538
    %555 = vst [vmem:[#allocation2 + $0x38] sm:$0xff] %v539
    %556 = vst [vmem:[#allocation2 + $0x40] sm:$0xff] %v540
    %557 = vst [vmem:[#allocation2 + $0x48] sm:$0xff] %v541
    %558 = vst [vmem:[#allocation2 + $0x50] sm:$0xff] %v542
    %559 = vst [vmem:[#allocation2 + $0x58] sm:$0xff] %v543
    %560 = vst [vmem:[#allocation2 + $0x60] sm:$0xff] %v544
    %561 = vst [vmem:[#allocation2 + $0x68] sm:$0xff] %v545
    %562 = vst [vmem:[#allocation2 + $0x70] sm:$0xff] %v546
    %563 = vst [vmem:[#allocation2 + $0x78] sm:$0xff] %v547
    // Predicated region
    $region18: #{partial_conv_pallas.1} parent=1 // pred_check
      _
    $region19: #{partial_conv_pallas.1} parent=1 // pred_check_branch
      %565 = sbr.rel (0) target = $region21
    $region20: #{partial_conv_pallas.1} parent=1 // pred_region
      %s567 = ssub.s32 2048, 2048
      %568 = vsyncadd [#allocation3], %s567
      %s569 = sshll.u32 [#allocation2], 4
      %s570 = int_to_ptr.vmem [resolvable:$true] %s569
      %575 = dma.vmem_to_hbm [thread:$0]  %s570, 2048, %s4, [#allocation3], 128, 128, 8
    $region21: #{partial_conv_pallas.1} parent=1 // pred_fallthru
      _
    // Predicated region
    $region22: #{partial_conv_pallas.1} parent=1 // pred_check
      _
    $region23: #{partial_conv_pallas.1} parent=1 // pred_check_branch
      %577 = sbr.rel (0) target = $region25
    $region24: #{partial_conv_pallas.1} parent=1 // pred_region
      %578 = dma.done [#allocation3], 2048
    $region25: #{partial_conv_pallas.1} parent=1 // pred_fallthru
      _
    %579 = vsyncpa [#allocation3], 1

</llo_original>
